<compile_context>
chip_gen: v7x
topology: tpu7x:2x2x1
jax: 0.10.0
libtpu: 0.0.40
codegen_flags: <defaults>
</compile_context>

<pallas_src>
import functools

import jax
import jax.numpy as jnp
from jax.experimental import pallas as pl
from jax.experimental.pallas import tpu as pltpu


def _round_up(x: int, m: int) -> int:
    return (x + m - 1) // m * m


def _cdiv(a: int, b: int) -> int:
    return -(-a // b)


def _mlp_kernel(x_ref, *refs, num_layers: int, matmul_dtype):
    """Fused MLP: o = L_{n-1}(relu(L_{n-2}(... relu(L_0(x)) ...)))."""
    o_ref = refs[-1]
    lhs = x_ref[...]
    if matmul_dtype is not None and lhs.dtype != matmul_dtype:
        lhs = lhs.astype(matmul_dtype)
    acc = None
    for i in range(num_layers):
        w_ref = refs[2 * i]
        b_ref = refs[2 * i + 1]
        acc = jnp.dot(lhs, w_ref[...], preferred_element_type=jnp.float32)
        acc = acc + b_ref[...].astype(jnp.float32)  # (1, D_out) broadcast on VPU
        if i < num_layers - 1:
            acc = jnp.maximum(acc, 0.0)
            lhs = acc if matmul_dtype is None else acc.astype(matmul_dtype)
    o_ref[...] = acc.astype(o_ref.dtype)


def mlp_forward(params, x, *, tm=None, matmul_dtype=jnp.bfloat16):
    """Forward pass identical to the PyTorch MLP.forward.

    params: list of (w, b) with w: (in, out) [transposed vs. torch], b: (1, out).
    x: arbitrary leading dims, last dim = input_dim.
    matmul_dtype: dtype of MXU operands (default bf16, f32 accumulation).
                  None / jnp.float32 -> bit-exact f32 path.
    """
    orig_shape = x.shape
    d_in = orig_shape[-1]
    num_layers = len(params)
    dims = [d_in] + [w.shape[1] for (w, _) in params]
    d_out = dims[-1]

    x2d = x.reshape(-1, d_in)
    m = x2d.shape[0]
    out_dtype = x.dtype

    # Cast the input to the matmul dtype in the wrapper (halves activation DMA
    # into the kernel). No lane padding: block last dim == true d_in is legal.
    x_in = x2d
    if matmul_dtype is not None and x_in.dtype != jnp.dtype(matmul_dtype):
        x_in = x_in.astype(matmul_dtype)

    in_item = jnp.dtype(x_in.dtype).itemsize
    out_item = jnp.dtype(out_dtype).itemsize
    # Sublane alignment for the (possibly packed) input dtype.
    row_align = {4: 8, 2: 16, 1: 32}.get(in_item, 8)

    # VMEM cap on the row tile: double-buffered in/out tiles + f32 working set.
    per_row_bytes = 2 * d_in * in_item + 2 * d_out * out_item + 2 * max(dims) * 4
    tm_cap = max(row_align, ((24 << 20) // per_row_bytes) // row_align * row_align)

    if tm is None:
        if m <= 512:
            tm = _round_up(m, row_align)  # single tile for small inputs
        else:
            # >= 2 grid steps so v7x's two TensorCores both get rows.
            half = _round_up(_cdiv(m, 2), row_align)
            best = None
            for cand in (2048, 1024, 512, 256):
                t = min(_round_up(cand, row_align), half)
                steps = _cdiv(m, t)
                score = (steps * t - m, -t)  # minimize pad overshoot, prefer big t
                if best is None or score < best[0]:
                    best = (score, t)
            tm = best[1]
    tm = _round_up(max(int(tm), row_align), row_align)
    tm = min(tm, tm_cap)
    m_pad = _round_up(m, tm)
    grid = (m_pad // tm,)

    if m_pad != m:  # only materialize a padded copy when actually needed
        x_in = jnp.pad(x_in, ((0, m_pad - m), (0, 0)))

    # Weights/biases: no shape padding (block == full array dims is legal).
    flat = []
    w_bytes = 0
    for (w, b) in params:
        wv = w
        if matmul_dtype is not None and wv.dtype != jnp.dtype(matmul_dtype):
            wv = wv.astype(matmul_dtype)
        # TODO(synk): if matmul_dtype is None and params are mixed-dtype, the dot
        # precision is whatever XLA picks for the mixed pair; normalize upstream.
        bv = jnp.reshape(b, (1, -1)).astype(jnp.float32)
        flat += [wv, bv]
        w_bytes += wv.size * jnp.dtype(wv.dtype).itemsize + bv.size * 4

    # Single-buffer the resident weights only when their footprint matters
    # (constant index_map -> double-buffering them is pure VMEM waste).
    single_buffer = w_bytes > (4 << 20)
    w_mode = pl.Buffered(1) if single_buffer else None

    def _const_spec(shape):
        if w_mode is None:
            return pl.BlockSpec(shape, lambda i: (0, 0))
        return pl.BlockSpec(shape, lambda i: (0, 0), pipeline_mode=w_mode)

    in_specs = [pl.BlockSpec((tm, d_in), lambda i: (i, 0))]
    for li in range(num_layers):
        din, dout = dims[li], dims[li + 1]
        in_specs.append(_const_spec((din, dout)))
        in_specs.append(_const_spec((1, dout)))
    out_spec = pl.BlockSpec((tm, d_out), lambda i: (i, 0))

    # Explicit scoped-VMEM budget (defaults are 16/32 MiB, well below physical).
    wbuf = 1 if single_buffer else 2
    footprint = (wbuf * w_bytes
                 + 2 * tm * d_in * in_item
                 + 2 * tm * d_out * out_item
                 + 2 * tm * max(dims) * 4)
    try:
        vmem_cap = int(pltpu.get_tpu_info().vmem_capacity_bytes)
    except Exception:
        vmem_cap = 64 << 20  # v7x per-TC capacity: safe cross-generation cap
    vmem_limit = min(max(32 << 20, int(1.5 * footprint) + (2 << 20)), vmem_cap)

    # TODO(synk): if wbuf*w_bytes approaches ~half the per-TC VMEM (v7x: 64 MiB),
    # switch to streaming weights layer-by-layer (emit_pipeline over the layer
    # axis) instead of keeping the whole stack resident.

    kernel = functools.partial(
        _mlp_kernel, num_layers=num_layers, matmul_dtype=matmul_dtype
    )
    out_p = pl.pallas_call(
        kernel,
        out_shape=jax.ShapeDtypeStruct((m_pad, d_out), out_dtype),
        grid_spec=pl.GridSpec(grid=grid, in_specs=in_specs, out_specs=out_spec),
        compiler_params=pltpu.CompilerParams(
            dimension_semantics=("parallel",),  # megacore split on v7x
            vmem_limit_bytes=vmem_limit,
        ),
    )(x_in, *flat)

    out = out_p if m_pad == m else out_p[:m]
    return out.reshape(orig_shape[:-1] + (d_out,))


def init_mlp_params(key, input_dim, hidden_dim, output_dim, num_layers,
                    dtype=jnp.float32):
    """Deterministic init matching nn.Linear shapes (weights pre-transposed)."""
    h = [hidden_dim] * (num_layers - 1)
    dims_in = [input_dim] + h
    dims_out = h + [output_dim]
    params = []
    for n, k in zip(dims_in, dims_out):
        key, kw, kb = jax.random.split(key, 3)
        bound = 1.0 / jnp.sqrt(jnp.asarray(n, dtype=jnp.float32))
        w = jax.random.uniform(kw, (n, k), dtype=dtype, minval=-bound, maxval=bound)
        b = jax.random.uniform(kb, (1, k), dtype=dtype, minval=-bound, maxval=bound)
        params.append((w, b))
    return params


def mlp_reference(params, x):
    """Plain-JAX reference for correctness checking."""
    num_layers = len(params)
    for i, (w, b) in enumerate(params):
        x = x @ w + b[0]
        if i < num_layers - 1:
            x = jnp.maximum(x, 0.0)
    return x


if __name__ == "__main__":
    key = jax.random.PRNGKey(0)
    key_params, key_x, key_x2 = jax.random.split(key, 3)

    # TransVG-style MLP head: MLP(32, 32, 4, 3) on a (2, 8, 32) activation.
    input_dim, hidden_dim, output_dim, num_layers = 32, 32, 4, 3
    params = init_mlp_params(key_params, input_dim, hidden_dim, output_dim,
                             num_layers)

    x = jax.random.normal(key_x, (2, 8, input_dim), dtype=jnp.float32)
    ref = mlp_reference(params, x)

    # Bit-exact f32 MXU path.
    out_f32 = jax.block_until_ready(
        mlp_forward(params, x, matmul_dtype=jnp.float32))
    assert out_f32.shape == (2, 8, output_dim), out_f32.shape
    assert jnp.allclose(out_f32, ref, atol=1e-5, rtol=1e-5), "f32 path mismatch"

    # Default bf16-operand / f32-accumulate MXU path (expected bf16 rounding).
    out_bf16 = jax.block_until_ready(mlp_forward(params, x))
    assert out_bf16.shape == (2, 8, output_dim), out_bf16.shape
    assert jnp.allclose(out_bf16, ref, atol=5e-2, rtol=5e-2), "bf16 path mismatch"

    # Larger M: exercises the multi-tile grid (>=2 steps) and row-padding path.
    x_big = jax.random.normal(key_x2, (2, 450, input_dim), dtype=jnp.float32)
    ref_big = mlp_reference(params, x_big)
    out_big = jax.block_until_ready(mlp_forward(params, x_big))
    assert out_big.shape == (2, 450, output_dim), out_big.shape
    assert jnp.allclose(out_big, ref_big, atol=5e-2, rtol=5e-2), "multi-tile mismatch"

    print("KERNEL_OK")
</pallas_src>

<mosaic_0001>
module attributes {stable_mosaic.version = 11 : i64} {
  func.func @_mlp_kernel(%arg0: i32, %arg1: memref<16x32xf32, #tpu.memory_space<vmem>>, %arg2: memref<32x32xf32, #tpu.memory_space<vmem>>, %arg3: memref<1x32xf32, #tpu.memory_space<vmem>>, %arg4: memref<32x32xf32, #tpu.memory_space<vmem>>, %arg5: memref<1x32xf32, #tpu.memory_space<vmem>>, %arg6: memref<32x4xf32, #tpu.memory_space<vmem>>, %arg7: memref<1x4xf32, #tpu.memory_space<vmem>>, %arg8: memref<16x4xf32, #tpu.memory_space<vmem>>) attributes {dimension_semantics = [#tpu.dimension_semantics<parallel>], iteration_bounds = array<i64: 1>, scalar_prefetch = 0 : i64, scratch_operands = 0 : i64, tpu.core_type = #tpu.core_type<tc>, window_params = [{transform_indices = @transform_0, window_bounds = array<i64: 16, 32>}, {pipeline_mode = #tpu.pipeline_mode<synchronous>, transform_indices = @transform_1, window_bounds = array<i64: 32, 32>}, {pipeline_mode = #tpu.pipeline_mode<synchronous>, transform_indices = @transform_2, window_bounds = array<i64: 1, 32>}, {pipeline_mode = #tpu.pipeline_mode<synchronous>, transform_indices = @transform_3, window_bounds = array<i64: 32, 32>}, {pipeline_mode = #tpu.pipeline_mode<synchronous>, transform_indices = @transform_4, window_bounds = array<i64: 1, 32>}, {pipeline_mode = #tpu.pipeline_mode<synchronous>, transform_indices = @transform_5, window_bounds = array<i64: 32, 4>}, {pipeline_mode = #tpu.pipeline_mode<synchronous>, transform_indices = @transform_6, window_bounds = array<i64: 1, 4>}, {transform_indices = @transform_7, window_bounds = array<i64: 16, 4>}]} {
    %c0 = arith.constant 0 : index
    %c0_0 = arith.constant 0 : index
    %0 = vector.load %arg1[%c0, %c0_0] : memref<16x32xf32, #tpu.memory_space<vmem>>, vector<16x32xf32>
    %c0_1 = arith.constant 0 : index
    %c0_2 = arith.constant 0 : index
    %1 = vector.load %arg2[%c0_1, %c0_2] : memref<32x32xf32, #tpu.memory_space<vmem>>, vector<32x32xf32>
    %cst = arith.constant dense<0.000000e+00> : vector<16x32xf32>
    %2 = tpu.matmul %0, %1, %cst {dimension_numbers = #tpu.dot_dimension_numbers<[1], [0], [0], [1], [0, 0, 1, 1], [], []>} : vector<16x32xf32>, vector<32x32xf32>, vector<16x32xf32> -> vector<16x32xf32>
    %c0_3 = arith.constant 0 : index
    %c0_4 = arith.constant 0 : index
    %3 = vector.load %arg3[%c0_3, %c0_4] : memref<1x32xf32, #tpu.memory_space<vmem>>, vector<1x32xf32>
    %4 = vector.broadcast %3 : vector<1x32xf32> to vector<16x32xf32>
    %5 = arith.addf %2, %4 : vector<16x32xf32>
    %cst_5 = arith.constant 0.000000e+00 : f32
    %6 = vector.broadcast %cst_5 : f32 to vector<16x32xf32>
    %7 = arith.maximumf %5, %6 : vector<16x32xf32>
    %c0_6 = arith.constant 0 : index
    %c0_7 = arith.constant 0 : index
    %8 = vector.load %arg4[%c0_6, %c0_7] : memref<32x32xf32, #tpu.memory_space<vmem>>, vector<32x32xf32>
    %cst_8 = arith.constant dense<0.000000e+00> : vector<16x32xf32>
    %9 = tpu.matmul %7, %8, %cst_8 {dimension_numbers = #tpu.dot_dimension_numbers<[1], [0], [0], [1], [0, 0, 1, 1], [], []>} : vector<16x32xf32>, vector<32x32xf32>, vector<16x32xf32> -> vector<16x32xf32>
    %c0_9 = arith.constant 0 : index
    %c0_10 = arith.constant 0 : index
    %10 = vector.load %arg5[%c0_9, %c0_10] : memref<1x32xf32, #tpu.memory_space<vmem>>, vector<1x32xf32>
    %11 = vector.broadcast %10 : vector<1x32xf32> to vector<16x32xf32>
    %12 = arith.addf %9, %11 : vector<16x32xf32>
    %cst_11 = arith.constant 0.000000e+00 : f32
    %13 = vector.broadcast %cst_11 : f32 to vector<16x32xf32>
    %14 = arith.maximumf %12, %13 : vector<16x32xf32>
    %c0_12 = arith.constant 0 : index
    %c0_13 = arith.constant 0 : index
    %15 = vector.load %arg6[%c0_12, %c0_13] : memref<32x4xf32, #tpu.memory_space<vmem>>, vector<32x4xf32>
    %cst_14 = arith.constant dense<0.000000e+00> : vector<16x4xf32>
    %16 = tpu.matmul %14, %15, %cst_14 {dimension_numbers = #tpu.dot_dimension_numbers<[1], [0], [0], [1], [0, 0, 1, 1], [], []>} : vector<16x32xf32>, vector<32x4xf32>, vector<16x4xf32> -> vector<16x4xf32>
    %c0_15 = arith.constant 0 : index
    %c0_16 = arith.constant 0 : index
    %17 = vector.load %arg7[%c0_15, %c0_16] : memref<1x4xf32, #tpu.memory_space<vmem>>, vector<1x4xf32>
    %18 = vector.broadcast %17 : vector<1x4xf32> to vector<16x4xf32>
    %19 = arith.addf %16, %18 : vector<16x4xf32>
    %c0_17 = arith.constant 0 : index
    %c0_18 = arith.constant 0 : index
    %20 = vector.load %arg8[%c0_17, %c0_18] : memref<16x4xf32, #tpu.memory_space<vmem>>, vector<16x4xf32>
    tpu.vector_store %arg8[%c0_17, %c0_18], %19 {strides = array<i32>} : memref<16x4xf32, #tpu.memory_space<vmem>>, vector<16x4xf32>,
    return
  }
  func.func @transform_0(%arg0: i32) -> (i32, i32) {
    %c0_i32 = arith.constant 0 : i32
    %c0_i32_0 = arith.constant 0 : i32
    return %arg0, %c0_i32 : i32, i32
  }
  func.func @transform_1(%arg0: i32) -> (i32, i32) {
    %c0_i32 = arith.constant 0 : i32
    %c0_i32_0 = arith.constant 0 : i32
    %c0_i32_1 = arith.constant 0 : i32
    return %c0_i32, %c0_i32_0 : i32, i32
  }
  func.func @transform_2(%arg0: i32) -> (i32, i32) {
    %c0_i32 = arith.constant 0 : i32
    %c0_i32_0 = arith.constant 0 : i32
    %c0_i32_1 = arith.constant 0 : i32
    return %c0_i32, %c0_i32_0 : i32, i32
  }
  func.func @transform_3(%arg0: i32) -> (i32, i32) {
    %c0_i32 = arith.constant 0 : i32
    %c0_i32_0 = arith.constant 0 : i32
    %c0_i32_1 = arith.constant 0 : i32
    return %c0_i32, %c0_i32_0 : i32, i32
  }
  func.func @transform_4(%arg0: i32) -> (i32, i32) {
    %c0_i32 = arith.constant 0 : i32
    %c0_i32_0 = arith.constant 0 : i32
    %c0_i32_1 = arith.constant 0 : i32
    return %c0_i32, %c0_i32_0 : i32, i32
  }
  func.func @transform_5(%arg0: i32) -> (i32, i32) {
    %c0_i32 = arith.constant 0 : i32
    %c0_i32_0 = arith.constant 0 : i32
    %c0_i32_1 = arith.constant 0 : i32
    return %c0_i32, %c0_i32_0 : i32, i32
  }
  func.func @transform_6(%arg0: i32) -> (i32, i32) {
    %c0_i32 = arith.constant 0 : i32
    %c0_i32_0 = arith.constant 0 : i32
    %c0_i32_1 = arith.constant 0 : i32
    return %c0_i32, %c0_i32_0 : i32, i32
  }
  func.func @transform_7(%arg0: i32) -> (i32, i32) {
    %c0_i32 = arith.constant 0 : i32
    %c0_i32_0 = arith.constant 0 : i32
    return %arg0, %c0_i32 : i32, i32
  }
}

</mosaic_0001>

<llo_original>
// kernel: tpu_custom_call.1
$region0: #{tpu_custom_call.1}
  #allocation0 [shape = 'u32[]', space=smem, size = 0x4, offset = 0x4, fixed_abs, tag = 'smem constant byte address 0x4 - core index']
  #allocation1 [shape = 'u32[144,128]{1,0:T(1,128)}', space=vmem, size = 0x12000, scoped, tag = 'internal scratch']
  %s0 = inlined_call_operand.hbm [shape: f32[16,32], index: 0, kind: input, shape index: {}]
  %s1 = inlined_call_operand.vmem [shape: f32[32,32], index: 1, kind: input, shape index: {}]
  %s2 = inlined_call_operand.vmem [shape: f32[1,32], index: 2, kind: input, shape index: {}]
  %s3 = inlined_call_operand.hbm [shape: f32[32,32], index: 3, kind: input, shape index: {}]
  %s4 = inlined_call_operand.vmem [shape: f32[1,32], index: 4, kind: input, shape index: {}]
  %s5 = inlined_call_operand.vmem [shape: f32[32,4], index: 5, kind: input, shape index: {}]
  %s6 = inlined_call_operand.vmem [shape: f32[1,4], index: 6, kind: input, shape index: {}]
  %s7 = inlined_call_operand.vmem [shape: f32[16,4], index: 7, kind: output, shape index: {}]
  %s8 = sld [smem:[#allocation0]]
  $region46: #{tpu_custom_call.1} parent=0
    _
  %s10 = ssub.s32 1, %s8
  %s11 = scalar_select 0, %s10, %s8
  $region1: #{tpu_custom_call.1} parent=0
    #allocation2 [shape = 'u8[8192]{0}', space=vmem, size = 0x2000, scoped, tag = 'input window, operand 0, single buffered']
    #allocation3 [shape = 's32[1]{0}', space=sflag, size = 0x4, scoped, tag = 'scoped memory for tpu_custom_call.1']
    #allocation4 [shape = 'u8[16384]{0}', space=vmem, size = 0x4000, scoped, tag = 'input window, operand 3, single buffered']
    #allocation5 [shape = 's32[1]{0}', space=sflag, size = 0x4, scoped, tag = 'scoped memory for tpu_custom_call.1']
    %12 = vsyncpa [#allocation3], 0
    %13 = vsyncpa [#allocation5], 0
    // Predicated region
    $region2: #{tpu_custom_call.1} parent=1 // pred_check
      _
    $region3: #{tpu_custom_call.1} parent=1 // pred_check_branch
      %15 = sbr.rel (0) target = $region5
    $region4: #{tpu_custom_call.1} parent=1 // pred_region
      %s17 = ssub.s32 256, 256
      %18 = vsyncadd [#allocation3], %s17
      %s19 = sshll.u32 [#allocation2], 4
      %s20 = int_to_ptr.vmem [resolvable:$true] %s19
      %25 = dma.hbm_to_vmem [thread:$0]  %s0, 256, %s20, [#allocation3], 128, 128, 8
    $region5: #{tpu_custom_call.1} parent=1 // pred_fallthru
      _
    // Predicated region
    $region6: #{tpu_custom_call.1} parent=1 // pred_check
      _
    $region7: #{tpu_custom_call.1} parent=1 // pred_check_branch
      %27 = sbr.rel (0) target = $region9
    $region8: #{tpu_custom_call.1} parent=1 // pred_region
      _
    $region9: #{tpu_custom_call.1} parent=1 // pred_fallthru
      _
    // Predicated region
    $region10: #{tpu_custom_call.1} parent=1 // pred_check
      _
    $region11: #{tpu_custom_call.1} parent=1 // pred_check_branch
      %29 = sbr.rel (0) target = $region13
    $region12: #{tpu_custom_call.1} parent=1 // pred_region
      _
    $region13: #{tpu_custom_call.1} parent=1 // pred_fallthru
      _
    // Predicated region
    $region14: #{tpu_custom_call.1} parent=1 // pred_check
      _
    $region15: #{tpu_custom_call.1} parent=1 // pred_check_branch
      %31 = sbr.rel (0) target = $region17
    $region16: #{tpu_custom_call.1} parent=1 // pred_region
      %s33 = ssub.s32 512, 512
      %34 = vsyncadd [#allocation5], %s33
      %s35 = sshll.u32 [#allocation4], 4
      %s36 = int_to_ptr.vmem [resolvable:$true] %s35
      %41 = dma.hbm_to_vmem [thread:$0]  %s3, 512, %s36, [#allocation5], 128, 128, 8
    $region17: #{tpu_custom_call.1} parent=1 // pred_fallthru
      _
    // Predicated region
    $region18: #{tpu_custom_call.1} parent=1 // pred_check
      _
    $region19: #{tpu_custom_call.1} parent=1 // pred_check_branch
      %43 = sbr.rel (0) target = $region21
    $region20: #{tpu_custom_call.1} parent=1 // pred_region
      _
    $region21: #{tpu_custom_call.1} parent=1 // pred_fallthru
      _
    // Predicated region
    $region22: #{tpu_custom_call.1} parent=1 // pred_check
      _
    $region23: #{tpu_custom_call.1} parent=1 // pred_check_branch
      %45 = sbr.rel (0) target = $region25
    $region24: #{tpu_custom_call.1} parent=1 // pred_region
      _
    $region25: #{tpu_custom_call.1} parent=1 // pred_fallthru
      _
    // Predicated region
    $region26: #{tpu_custom_call.1} parent=1 // pred_check
      _
    $region27: #{tpu_custom_call.1} parent=1 // pred_check_branch
      %47 = sbr.rel (0) target = $region29
    $region28: #{tpu_custom_call.1} parent=1 // pred_region
      _
    $region29: #{tpu_custom_call.1} parent=1 // pred_fallthru
      _
    // Predicated region
    $region30: #{tpu_custom_call.1} parent=1 // pred_check
      _
    $region31: #{tpu_custom_call.1} parent=1 // pred_check_branch
      %49 = sbr.rel (0) target = $region33
    $region32: #{tpu_custom_call.1} parent=1 // pred_region
      %50 = dma.done [#allocation3], 256
    $region33: #{tpu_custom_call.1} parent=1 // pred_fallthru
      _
    // Predicated region
    $region34: #{tpu_custom_call.1} parent=1 // pred_check
      _
    $region35: #{tpu_custom_call.1} parent=1 // pred_check_branch
      %52 = sbr.rel (0) target = $region37
    $region36: #{tpu_custom_call.1} parent=1 // pred_region
      %53 = dma.done [#allocation5], 512
    $region37: #{tpu_custom_call.1} parent=1 // pred_fallthru
      _
    %v54 = vld [vmem:[#allocation2] sm:$0xff]
    %v55 = vld [vmem:[#allocation2 + $0x8] sm:$0xff]
    %v56 = vld [vmem:[%s1] sm:$0xff]
    %v57 = vld [vmem:[%s1 + $0x8] sm:$0xff]
    %v58 = vld [vmem:[%s1 + $0x10] sm:$0xff]
    %v59 = vld [vmem:[%s1 + $0x18] sm:$0xff]
    %v60 = vld [vmem:[%s2] sm:$0x1]
    %v62 = vlaneseq
    %v63 = vshrl.u32 %v62, 7
    %v64 = vsub.s32 0, %v63
    %v65 = vrot.slane %v60, %v64
    %vm67 = vcmask 261120
    %v69 = vsel %vm67, %v54, 0
    %v72 = vsel %vm67, %v55, 0
    %74 = vmatprep.subr.mxu0 0.0
    %75 = vmatpush1.msra.mxu0 %v56
    %76 = vmatprep.subr.mxu0 0.0
    %77 = vmatpush1.msra.mxu0 %v57
    %78 = vmatprep.subr.mxu0 0.0
    %79 = vmatpush1.msra.mxu0 %v58
    %80 = vmatprep.subr.mxu0 0.0
    %81 = vmatpush1.msra.mxu0 %v59
    %82 = vmatprep.subr.mxu0 0.0
    %83 = vmatpush1.msra.mxu0 0.0
    %84 = vmatprep.subr.mxu0 0.0
    %85 = vmatpush1.msra.mxu0 0.0
    %86 = vmatprep.subr.mxu0 0.0
    %87 = vmatpush1.msra.mxu0 0.0
    %88 = vmatprep.subr.mxu0 0.0
    %89 = vmatpush1.msra.mxu0 0.0
    %90 = vmatprep.subr.mxu0 0.0
    %91 = vmatpush1.msra.mxu0 0.0
    %92 = vmatprep.subr.mxu0 0.0
    %93 = vmatpush1.msra.mxu0 0.0
    %94 = vmatprep.subr.mxu0 0.0
    %95 = vmatpush1.msra.mxu0 0.0
    %96 = vmatprep.subr.mxu0 0.0
    %97 = vmatpush1.msra.mxu0 0.0
    %98 = vmatprep.subr.mxu0 0.0
    %99 = vmatpush1.msra.mxu0 0.0
    %100 = vmatprep.subr.mxu0 0.0
    %101 = vmatpush1.msra.mxu0 0.0
    %102 = vmatprep.subr.mxu0 0.0
    %103 = vmatpush1.msra.mxu0 0.0
    %104 = vmatprep.subr.mxu0 0.0
    %105 = vmatpush1.msra.mxu0 0.0
    %106 = vmatprep.subr.mxu0 0.0
    %107 = vmatpush1.msra.mxu0 0.0
    %108 = vmatprep.subr.mxu0 0.0
    %109 = vmatpush1.msra.mxu0 0.0
    %110 = vmatprep.subr.mxu0 0.0
    %111 = vmatpush1.msra.mxu0 0.0
    %112 = vmatprep.subr.mxu0 0.0
    %113 = vmatpush1.msra.mxu0 0.0
    %114 = vmatprep.subr.mxu0 0.0
    %115 = vmatpush1.msra.mxu0 0.0
    %116 = vmatprep.subr.mxu0 0.0
    %117 = vmatpush1.msra.mxu0 0.0
    %118 = vmatprep.subr.mxu0 0.0
    %119 = vmatpush1.msra.mxu0 0.0
    %120 = vmatprep.subr.mxu0 0.0
    %121 = vmatpush1.msra.mxu0 0.0
    %122 = vmatprep.subr.mxu0 0.0
    %123 = vmatpush1.msra.mxu0 0.0
    %124 = vmatprep.subr.mxu0 0.0
    %125 = vmatpush1.msra.mxu0 0.0
    %126 = vmatprep.subr.mxu0 0.0
    %127 = vmatpush1.msra.mxu0 0.0
    %128 = vmatprep.subr.mxu0 0.0
    %129 = vmatpush1.msra.mxu0 0.0
    %130 = vmatprep.subr.mxu0 0.0
    %131 = vmatpush1.msra.mxu0 0.0
    %132 = vmatprep.subr.mxu0 0.0
    %133 = vmatpush1.msra.mxu0 0.0
    %134 = vmatprep.subr.mxu0 0.0
    %135 = vmatpush1.msra.mxu0 0.0
    %136 = vmatprep.subr.mxu0 0.0
    %137 = vmatpush1.msra.mxu0 0.0
    %138 = vmatprep.mubr.f32.mxu0 0.0
    %139 = vmatmul.mubr.f32.gmra.mrb[0].mxu0 %v69
    %v140 = vpop.f32.mrb[0].mxu0
    %v141 = vadd.f32 %v65, %v140
    %v142 = vpop.f32.mrb[0].mxu0
    %143 = vmatprep.mubr.f32.mxu0 0.0
    %144 = vmatmul.mubr.f32.gmra.mrb[0].mxu0 %v72
    %v145 = vpop.f32.mrb[0].mxu0
    %v146 = vadd.f32 %v65, %v145
    %v147 = vpop.f32.mrb[0].mxu0
    %148 = vdwg.mxu0
    %v149 = vmax.f32 %v141, 0.0
    %v150 = vmax.f32 %v146, 0.0
    %v151 = vld [vmem:[#allocation4] sm:$0xff]
    %v152 = vld [vmem:[#allocation4 + $0x8] sm:$0xff]
    %v153 = vld [vmem:[#allocation4 + $0x10] sm:$0xff]
    %v154 = vld [vmem:[#allocation4 + $0x18] sm:$0xff]
    %v155 = vld [vmem:[%s4] sm:$0x1]
    %v157 = vlaneseq
    %v158 = vshrl.u32 %v157, 7
    %v159 = vsub.s32 0, %v158
    %v160 = vrot.slane %v155, %v159
    %v163 = vsel %vm67, %v149, 0
    %v166 = vsel %vm67, %v150, 0
    %168 = vmatprep.subr.mxu0 0.0
    %169 = vmatpush1.msra.mxu0 %v151
    %170 = vmatprep.subr.mxu0 0.0
    %171 = vmatpush1.msra.mxu0 %v152
    %172 = vmatprep.subr.mxu0 0.0
    %173 = vmatpush1.msra.mxu0 %v153
    %174 = vmatprep.subr.mxu0 0.0
    %175 = vmatpush1.msra.mxu0 %v154
    %176 = vmatprep.subr.mxu0 0.0
    %177 = vmatpush1.msra.mxu0 0.0
    %178 = vmatprep.subr.mxu0 0.0
    %179 = vmatpush1.msra.mxu0 0.0
    %180 = vmatprep.subr.mxu0 0.0
    %181 = vmatpush1.msra.mxu0 0.0
    %182 = vmatprep.subr.mxu0 0.0
    %183 = vmatpush1.msra.mxu0 0.0
    %184 = vmatprep.subr.mxu0 0.0
    %185 = vmatpush1.msra.mxu0 0.0
    %186 = vmatprep.subr.mxu0 0.0
    %187 = vmatpush1.msra.mxu0 0.0
    %188 = vmatprep.subr.mxu0 0.0
    %189 = vmatpush1.msra.mxu0 0.0
    %190 = vmatprep.subr.mxu0 0.0
    %191 = vmatpush1.msra.mxu0 0.0
    %192 = vmatprep.subr.mxu0 0.0
    %193 = vmatpush1.msra.mxu0 0.0
    %194 = vmatprep.subr.mxu0 0.0
    %195 = vmatpush1.msra.mxu0 0.0
    %196 = vmatprep.subr.mxu0 0.0
    %197 = vmatpush1.msra.mxu0 0.0
    %198 = vmatprep.subr.mxu0 0.0
    %199 = vmatpush1.msra.mxu0 0.0
    %200 = vmatprep.subr.mxu0 0.0
    %201 = vmatpush1.msra.mxu0 0.0
    %202 = vmatprep.subr.mxu0 0.0
    %203 = vmatpush1.msra.mxu0 0.0
    %204 = vmatprep.subr.mxu0 0.0
    %205 = vmatpush1.msra.mxu0 0.0
    %206 = vmatprep.subr.mxu0 0.0
    %207 = vmatpush1.msra.mxu0 0.0
    %208 = vmatprep.subr.mxu0 0.0
    %209 = vmatpush1.msra.mxu0 0.0
    %210 = vmatprep.subr.mxu0 0.0
    %211 = vmatpush1.msra.mxu0 0.0
    %212 = vmatprep.subr.mxu0 0.0
    %213 = vmatpush1.msra.mxu0 0.0
    %214 = vmatprep.subr.mxu0 0.0
    %215 = vmatpush1.msra.mxu0 0.0
    %216 = vmatprep.subr.mxu0 0.0
    %217 = vmatpush1.msra.mxu0 0.0
    %218 = vmatprep.subr.mxu0 0.0
    %219 = vmatpush1.msra.mxu0 0.0
    %220 = vmatprep.subr.mxu0 0.0
    %221 = vmatpush1.msra.mxu0 0.0
    %222 = vmatprep.subr.mxu0 0.0
    %223 = vmatpush1.msra.mxu0 0.0
    %224 = vmatprep.subr.mxu0 0.0
    %225 = vmatpush1.msra.mxu0 0.0
    %226 = vmatprep.subr.mxu0 0.0
    %227 = vmatpush1.msra.mxu0 0.0
    %228 = vmatprep.subr.mxu0 0.0
    %229 = vmatpush1.msra.mxu0 0.0
    %230 = vmatprep.subr.mxu0 0.0
    %231 = vmatpush1.msra.mxu0 0.0
    %232 = vmatprep.mubr.f32.mxu0 0.0
    %233 = vmatmul.mubr.f32.gmra.mrb[0].mxu0 %v163
    %v234 = vpop.f32.mrb[0].mxu0
    %v235 = vadd.f32 %v160, %v234
    %v236 = vpop.f32.mrb[0].mxu0
    %237 = vmatprep.mubr.f32.mxu0 0.0
    %238 = vmatmul.mubr.f32.gmra.mrb[0].mxu0 %v166
    %v239 = vpop.f32.mrb[0].mxu0
    %v240 = vadd.f32 %v160, %v239
    %v241 = vpop.f32.mrb[0].mxu0
    %242 = vdwg.mxu0
    %v243 = vmax.f32 %v235, 0.0
    %v244 = vmax.f32 %v240, 0.0
    %v245 = vld [vmem:[%s5] sm:$0xff]
    %v246 = vld [vmem:[%s5 + $0x8] sm:$0xff]
    %v247 = vld [vmem:[%s5 + $0x10] sm:$0xff]
    %v248 = vld [vmem:[%s5 + $0x18] sm:$0xff]
    %v249 = vld [vmem:[%s6] sm:$0x1]
    %v251 = vlaneseq
    %v252 = vshrl.u32 %v251, 7
    %v253 = vsub.s32 0, %v252
    %v254 = vrot.slane %v249, %v253
    %v257 = vsel %vm67, %v243, 0
    %v260 = vsel %vm67, %v244, 0
    %262 = vmatprep.subr.mxu0 0.0
    %263 = vmatpush1.msra.mxu0 %v245
    %264 = vmatprep.subr.mxu0 0.0
    %265 = vmatpush1.msra.mxu0 %v246
    %266 = vmatprep.subr.mxu0 0.0
    %267 = vmatpush1.msra.mxu0 %v247
    %268 = vmatprep.subr.mxu0 0.0
    %269 = vmatpush1.msra.mxu0 %v248
    %270 = vmatprep.subr.mxu0 0.0
    %271 = vmatpush1.msra.mxu0 0.0
    %272 = vmatprep.subr.mxu0 0.0
    %273 = vmatpush1.msra.mxu0 0.0
    %274 = vmatprep.subr.mxu0 0.0
    %275 = vmatpush1.msra.mxu0 0.0
    %276 = vmatprep.subr.mxu0 0.0
    %277 = vmatpush1.msra.mxu0 0.0
    %278 = vmatprep.subr.mxu0 0.0
    %279 = vmatpush1.msra.mxu0 0.0
    %280 = vmatprep.subr.mxu0 0.0
    %281 = vmatpush1.msra.mxu0 0.0
    %282 = vmatprep.subr.mxu0 0.0
    %283 = vmatpush1.msra.mxu0 0.0
    %284 = vmatprep.subr.mxu0 0.0
    %285 = vmatpush1.msra.mxu0 0.0
    %286 = vmatprep.subr.mxu0 0.0
    %287 = vmatpush1.msra.mxu0 0.0
    %288 = vmatprep.subr.mxu0 0.0
    %289 = vmatpush1.msra.mxu0 0.0
    %290 = vmatprep.subr.mxu0 0.0
    %291 = vmatpush1.msra.mxu0 0.0
    %292 = vmatprep.subr.mxu0 0.0
    %293 = vmatpush1.msra.mxu0 0.0
    %294 = vmatprep.subr.mxu0 0.0
    %295 = vmatpush1.msra.mxu0 0.0
    %296 = vmatprep.subr.mxu0 0.0
    %297 = vmatpush1.msra.mxu0 0.0
    %298 = vmatprep.subr.mxu0 0.0
    %299 = vmatpush1.msra.mxu0 0.0
    %300 = vmatprep.subr.mxu0 0.0
    %301 = vmatpush1.msra.mxu0 0.0
    %302 = vmatprep.subr.mxu0 0.0
    %303 = vmatpush1.msra.mxu0 0.0
    %304 = vmatprep.subr.mxu0 0.0
    %305 = vmatpush1.msra.mxu0 0.0
    %306 = vmatprep.subr.mxu0 0.0
    %307 = vmatpush1.msra.mxu0 0.0
    %308 = vmatprep.subr.mxu0 0.0
    %309 = vmatpush1.msra.mxu0 0.0
    %310 = vmatprep.subr.mxu0 0.0
    %311 = vmatpush1.msra.mxu0 0.0
    %312 = vmatprep.subr.mxu0 0.0
    %313 = vmatpush1.msra.mxu0 0.0
    %314 = vmatprep.subr.mxu0 0.0
    %315 = vmatpush1.msra.mxu0 0.0
    %316 = vmatprep.subr.mxu0 0.0
    %317 = vmatpush1.msra.mxu0 0.0
    %318 = vmatprep.subr.mxu0 0.0
    %319 = vmatpush1.msra.mxu0 0.0
    %320 = vmatprep.subr.mxu0 0.0
    %321 = vmatpush1.msra.mxu0 0.0
    %322 = vmatprep.subr.mxu0 0.0
    %323 = vmatpush1.msra.mxu0 0.0
    %324 = vmatprep.subr.mxu0 0.0
    %325 = vmatpush1.msra.mxu0 0.0
    %326 = vmatprep.mubr.f32.mxu0 0.0
    %327 = vmatmul.mubr.f32.gmra.mrb[0].mxu0 %v257
    %v328 = vpop.f32.mrb[0].mxu0
    %v329 = vadd.f32 %v254, %v328
    %v330 = vpop.f32.mrb[0].mxu0
    %331 = vmatprep.mubr.f32.mxu0 0.0
    %332 = vmatmul.mubr.f32.gmra.mrb[0].mxu0 %v260
    %v333 = vpop.f32.mrb[0].mxu0
    %v334 = vadd.f32 %v254, %v333
    %v335 = vpop.f32.mrb[0].mxu0
    %336 = vdwg.mxu0
    %vm337 = vcmask 31744
    %338 = vst.msk [vmem:[%s7] sm:$0xff] %vm337, %v329
    %339 = vst.msk [vmem:[%s7 + $0x8] sm:$0xff] %vm337, %v334
    // Predicated region
    $region38: #{tpu_custom_call.1} parent=1 // pred_check
      _
    $region39: #{tpu_custom_call.1} parent=1 // pred_check_branch
      %341 = sbr.rel (0) target = $region41
    $region40: #{tpu_custom_call.1} parent=1 // pred_region
      _
    $region41: #{tpu_custom_call.1} parent=1 // pred_fallthru
      _
    // Predicated region
    $region42: #{tpu_custom_call.1} parent=1 // pred_check
      _
    $region43: #{tpu_custom_call.1} parent=1 // pred_check_branch
      %343 = sbr.rel (0) target = $region45
    $region44: #{tpu_custom_call.1} parent=1 // pred_region
      _
    $region45: #{tpu_custom_call.1} parent=1 // pred_fallthru
      _
    %344 = vsyncpa [#allocation3], 1
    %345 = vsyncpa [#allocation5], 1

</llo_original>
